<compile_context>
chip_gen: v7x
topology: tpu7x:2x2x1
jax: 0.10.0
libtpu: 0.0.40
codegen_flags: <defaults>
</compile_context>

<pallas_src>
import functools

import jax
import jax.numpy as jnp
from jax.experimental import pallas as pl
from jax.experimental.pallas import tpu as pltpu


LANE = 128     # TPU lane width
H_PAD = 128    # hidden dim padded to one full lane group


# ----------------------------- Pallas kernels -----------------------------

def _accumulate(a_ref, rhs_ref, acc_ref):
    """acc += A_tile @ rhs[k-tile]  (f32 accumulation on the MXU)."""
    k = pl.program_id(1)
    tk = a_ref.shape[1]
    off = pl.multiple_of(k * tk, tk)
    rhs_k = rhs_ref[pl.ds(off, tk), :]
    acc_ref[...] += jnp.dot(a_ref[...], rhs_k, preferred_element_type=jnp.float32)


def _digcn_layer_kernel(a_ref, xw_ref, b_ref, h_ref, acc_ref):
    """One DIGCNConv + ReLU:  h = relu(A @ XW + b), A streamed over (i, k) tiles."""
    k = pl.program_id(1)
    nk = pl.num_programs(1)

    @pl.when(k == 0)
    def _init():
        acc_ref[...] = jnp.zeros_like(acc_ref)

    _accumulate(a_ref, xw_ref, acc_ref)

    @pl.when(k == nk - 1)
    def _finalize():
        h = jnp.maximum(acc_ref[...] + b_ref[...], 0.0)
        h_ref[...] = h.astype(h_ref.dtype)


def _digcn_head_kernel(a_ref, hw_ref, b_ref, wc_ref, bc_ref,
                       logp_ref, prob_ref, acc_ref):
    """Second DIGCNConv + ReLU + 1x1-conv head + log_softmax/softmax (fused epilogue)."""
    k = pl.program_id(1)
    nk = pl.num_programs(1)

    @pl.when(k == 0)
    def _init():
        acc_ref[...] = jnp.zeros_like(acc_ref)

    _accumulate(a_ref, hw_ref, acc_ref)

    @pl.when(k == nk - 1)
    def _finalize():
        h2 = jnp.maximum(acc_ref[...] + b_ref[...], 0.0)
        # 1x1 Conv1d folded into a lane-padded matmul; padded class columns get
        # a -1e30 f32 bias so they never influence the softmax.
        logits = jnp.dot(h2.astype(wc_ref.dtype), wc_ref[...],
                         preferred_element_type=jnp.float32) + bc_ref[...]
        m = jnp.max(logits, axis=1, keepdims=True)
        z = logits - m
        s = jnp.sum(jnp.exp(z), axis=1, keepdims=True)
        logp = z - jnp.log(s)
        logp_ref[...] = logp.astype(logp_ref.dtype)
        prob_ref[...] = jnp.exp(logp).astype(prob_ref.dtype)   # softmax without a divide


# ----------------------------- JAX glue -----------------------------

def _round_up(x, m):
    return (x + m - 1) // m * m


def _pick_tiles(n):
    """(n_pad, TM, TK): tile sizes for streaming the N x N adjacency."""
    n_pad = _round_up(max(n, 1), 128)
    if n_pad <= 512:                 # small graphs: single tile, one grid step
        return n_pad, n_pad, n_pad
    n_pad = _round_up(n, 512)        # multiple of both TM and TK
    return n_pad, 256, 512


def dense_adj(edge_index, edge_weight, n):
    """A[i, j] = sum of edge_weight over edges j -> i (aggr='add', source_to_target)."""
    src, dst = edge_index[0], edge_index[1]
    return jnp.zeros((n, n), jnp.float32).at[dst, src].add(edge_weight)


def dimodel_forward(params, x, edge_index, edge_weight, *,
                    compute_dtype=jnp.bfloat16):
    n = x.shape[0]
    w1, b1 = params['w1'], params['b1']
    w2, b2 = params['w2'], params['b2']
    conv_w, conv_b = params['conv_w'], params['conv_b']   # Conv1d: [C, H, 1], [C]

    hidden = w1.shape[1]
    c = conv_w.shape[0]
    c_pad = _round_up(c, LANE)

    n_pad, tm, tk = _pick_tiles(n)
    grid = (n_pad // tm, n_pad // tk)

    # Dense adjacency via scatter-add (f32 for exact duplicate-edge accumulation),
    # then cast to the streaming dtype.  Padded rows/cols are zero, so padded
    # nodes never contribute to real outputs.
    a = jnp.zeros((n_pad, n_pad), jnp.float32)
    a = a.at[edge_index[1], edge_index[0]].add(edge_weight).astype(compute_dtype)

    # Lane-pad hidden/class dims; fold the Conv1d(kernel_size=1) head into a matmul.
    xw1 = jnp.zeros((n_pad, H_PAD), jnp.float32).at[:n, :hidden].set(
        jnp.dot(x, w1, preferred_element_type=jnp.float32)).astype(compute_dtype)
    b1p = jnp.zeros((1, H_PAD), jnp.float32).at[0, :hidden].set(b1)
    b2p = jnp.zeros((1, H_PAD), jnp.float32).at[0, :hidden].set(b2)
    w2p = jnp.zeros((H_PAD, H_PAD), jnp.float32).at[:hidden, :hidden].set(w2) \
             .astype(compute_dtype)
    wcp = jnp.zeros((H_PAD, c_pad), jnp.float32).at[:hidden, :c].set(conv_w[:, :, 0].T) \
             .astype(compute_dtype)
    bcp = jnp.full((1, c_pad), -1e30, jnp.float32).at[0, :c].set(conv_b)   # f32 sentinel

    cparams = pltpu.CompilerParams(
        dimension_semantics=("parallel", "arbitrary"),   # rows shard (v7x 2 TCs), k reduces
        vmem_limit_bytes=32 * 1024 * 1024,               # > v5e's 16 MiB default scoped VMEM
    )

    a_spec = pl.BlockSpec((tm, tk), lambda i, k: (i, k))
    resident = lambda shape: pl.BlockSpec(shape, lambda i, k: (0, 0))   # fetched once

    # ---- Layer 1: h1 = relu(A @ (x @ W1) + b1) ----
    h1 = pl.pallas_call(
        _digcn_layer_kernel,
        out_shape=jax.ShapeDtypeStruct((n_pad, H_PAD), compute_dtype),
        grid=grid,
        in_specs=[a_spec, resident((n_pad, H_PAD)), resident((1, H_PAD))],
        out_specs=pl.BlockSpec((tm, H_PAD), lambda i, k: (i, 0)),
        scratch_shapes=[pltpu.VMEM((tm, H_PAD), jnp.float32)],
        compiler_params=cparams,
    )(a, xw1, b1p)

    # h1 @ W2 is a tiny (N x 128 x 128) matmul -> negligible next to the A stream.
    hw2 = jnp.dot(h1, w2p, preferred_element_type=jnp.float32).astype(compute_dtype)

    # ---- Layer 2 + head: relu(A @ (h1 @ W2) + b2) -> 1x1 conv -> log_softmax/softmax ----
    logp_pad, prob_pad = pl.pallas_call(
        _digcn_head_kernel,
        out_shape=(jax.ShapeDtypeStruct((n_pad, c_pad), jnp.float32),
                   jax.ShapeDtypeStruct((n_pad, c_pad), jnp.float32)),
        grid=grid,
        in_specs=[a_spec, resident((n_pad, H_PAD)), resident((1, H_PAD)),
                  resident((H_PAD, c_pad)), resident((1, c_pad))],
        out_specs=(pl.BlockSpec((tm, c_pad), lambda i, k: (i, 0)),
                   pl.BlockSpec((tm, c_pad), lambda i, k: (i, 0))),
        scratch_shapes=[pltpu.VMEM((tm, H_PAD), jnp.float32)],
        compiler_params=cparams,
    )(a, hw2, b2p, wcp, bcp)

    # TODO(synk): when bf16 A fits VMEM (generation-dependent), a single fused
    # call with a constant A index_map would stream A once instead of twice.
    return logp_pad[:n, :c], prob_pad[:n, :c]


def reference_forward(params, x, edge_index, edge_weight):
    """Pure-JAX reference mirroring the PyTorch forward semantics."""
    n = x.shape[0]
    a = dense_adj(edge_index, edge_weight, n)
    h = jax.nn.relu(a @ (x @ params['w1']) + params['b1'])
    h = jax.nn.relu(a @ (h @ params['w2']) + params['b2'])
    # TODO(synk): F.dropout skipped (dropout=0 config -> no-op).
    logits = h @ params['conv_w'][:, :, 0].T + params['conv_b']
    return jax.nn.log_softmax(logits, axis=1), jax.nn.softmax(logits, axis=1)


# ----------------------------- main -----------------------------

if __name__ == "__main__":
    key = jax.random.PRNGKey(0)
    # args: num_features=16, num_filter=32, C=8, layer=2, dropout=0
    N, F_IN, H, C, E = 16, 16, 32, 8, 48
    ks = jax.random.split(key, 8)

    x = jax.random.normal(ks[0], (N, F_IN), jnp.float32)
    edge_index = jax.random.randint(ks[1], (2, E), 0, N)
    edge_weight = jax.random.uniform(ks[2], (E,), jnp.float32)

    def glorot(k, shape):
        limit = (6.0 / (shape[0] + shape[1])) ** 0.5
        return jax.random.uniform(k, shape, jnp.float32, -limit, limit)

    # DIGCNConv: glorot weights, zero biases (reset_parameters); Conv1d head: random.
    params = {
        'w1': glorot(ks[3], (F_IN, H)), 'b1': jnp.zeros((H,), jnp.float32),
        'w2': glorot(ks[4], (H, H)),    'b2': jnp.zeros((H,), jnp.float32),
        'conv_w': jax.random.normal(ks[5], (C, H, 1), jnp.float32) * 0.2,
        'conv_b': jax.random.normal(ks[6], (C,), jnp.float32) * 0.1,
    }
    # TODO(synk): args.layer == 3 (optional conv3) and training-mode dropout are
    # not instantiated in this config (layer=2, dropout=0 -> both are no-ops).

    logp_ref, prob_ref = jax.block_until_ready(
        reference_forward(params, x, edge_index, edge_weight))

    # --- f32 validation path: must match the f32 reference tightly. ---
    logp, prob = jax.block_until_ready(
        dimodel_forward(params, x, edge_index, edge_weight,
                        compute_dtype=jnp.float32))
    assert logp.shape == (N, C) and prob.shape == (N, C)
    err_lp = float(jnp.max(jnp.abs(logp - logp_ref)))
    err_p = float(jnp.max(jnp.abs(prob - prob_ref)))
    assert jnp.allclose(logp, logp_ref, atol=2e-4, rtol=2e-4), \
        f"f32 log_softmax max abs err = {err_lp}"
    assert jnp.allclose(prob, prob_ref, atol=2e-4, rtol=2e-4), \
        f"f32 softmax max abs err = {err_p}"

    # --- bf16 production path (default): A + MXU operands in bf16, f32 accumulate. ---
    logp_bf, prob_bf = jax.block_until_ready(
        dimodel_forward(params, x, edge_index, edge_weight,
                        compute_dtype=jnp.bfloat16))
    err_lp_bf = float(jnp.max(jnp.abs(logp_bf - logp_ref)))
    err_p_bf = float(jnp.max(jnp.abs(prob_bf - prob_ref)))
    assert jnp.allclose(logp_bf, logp_ref, atol=1e-1, rtol=1e-1), \
        f"bf16 log_softmax max abs err = {err_lp_bf}"
    assert jnp.allclose(prob_bf, prob_ref, atol=1e-1, rtol=1e-1), \
        f"bf16 softmax max abs err = {err_p_bf}"

    print("KERNEL_OK")
</pallas_src>

<mosaic_0001>
module attributes {stable_mosaic.version = 11 : i64} {
  func.func @_digcn_layer_kernel(%arg0: i32, %arg1: i32, %arg2: memref<128x128xf32, #tpu.memory_space<vmem>>, %arg3: memref<128x128xf32, #tpu.memory_space<vmem>>, %arg4: memref<1x128xf32, #tpu.memory_space<vmem>>, %arg5: memref<128x128xf32, #tpu.memory_space<vmem>>, %arg6: memref<128x128xf32, #tpu.memory_space<vmem>>) attributes {dimension_semantics = [#tpu.dimension_semantics<parallel>, #tpu.dimension_semantics<arbitrary>], iteration_bounds = array<i64: 1, 1>, scalar_prefetch = 0 : i64, scratch_operands = 1 : i64, tpu.core_type = #tpu.core_type<tc>, window_params = [{transform_indices = @transform_0, window_bounds = array<i64: 128, 128>}, {pipeline_mode = #tpu.pipeline_mode<synchronous>, transform_indices = @transform_1, window_bounds = array<i64: 128, 128>}, {pipeline_mode = #tpu.pipeline_mode<synchronous>, transform_indices = @transform_2, window_bounds = array<i64: 1, 128>}, {transform_indices = @transform_3, window_bounds = array<i64: 128, 128>}]} {
    %c0_i32 = arith.constant 0 : i32
    %0 = arith.cmpi eq, %arg1, %c0_i32 : i32
    %1 = arith.extui %0 : i1 to i32
    %c0_i32_0 = arith.constant 0 : i32
    %2 = arith.cmpi ne, %1, %c0_i32_0 : i32
    scf.if %2 {
      %cst_9 = arith.constant 0.000000e+00 : f32
      %15 = vector.broadcast %cst_9 : f32 to vector<128x128xf32>
      %c0_10 = arith.constant 0 : index
      %c0_11 = arith.constant 0 : index
      %16 = vector.load %arg6[%c0_10, %c0_11] : memref<128x128xf32, #tpu.memory_space<vmem>>, vector<128x128xf32>
      tpu.vector_store %arg6[%c0_10, %c0_11], %15 {strides = array<i32>} : memref<128x128xf32, #tpu.memory_space<vmem>>, vector<128x128xf32>,
    } else {
    }
    %c128_i32 = arith.constant 128 : i32
    %3 = arith.muli %arg1, %c128_i32 : i32
    %4 = tpu.assume_multiple %3, 128 : i32
    %5 = arith.index_cast %4 : i32 to index
    %c0 = arith.constant 0 : index
    %6 = vector.load %arg3[%5, %c0] : memref<128x128xf32, #tpu.memory_space<vmem>>, vector<128x128xf32>
    %c0_1 = arith.constant 0 : index
    %c0_2 = arith.constant 0 : index
    %7 = vector.load %arg6[%c0_1, %c0_2] : memref<128x128xf32, #tpu.memory_space<vmem>>, vector<128x128xf32>
    %c0_3 = arith.constant 0 : index
    %c0_4 = arith.constant 0 : index
    %8 = vector.load %arg2[%c0_3, %c0_4] : memref<128x128xf32, #tpu.memory_space<vmem>>, vector<128x128xf32>
    %cst = arith.constant dense<0.000000e+00> : vector<128x128xf32>
    %9 = tpu.matmul %8, %6, %cst {dimension_numbers = #tpu.dot_dimension_numbers<[1], [0], [0], [1], [0, 0, 1, 1], [], []>} : vector<128x128xf32>, vector<128x128xf32>, vector<128x128xf32> -> vector<128x128xf32>
    %10 = arith.addf %7, %9 : vector<128x128xf32>
    %c0_5 = arith.constant 0 : index
    %c0_6 = arith.constant 0 : index
    %11 = vector.load %arg6[%c0_5, %c0_6] : memref<128x128xf32, #tpu.memory_space<vmem>>, vector<128x128xf32>
    tpu.vector_store %arg6[%c0_5, %c0_6], %10 {strides = array<i32>} : memref<128x128xf32, #tpu.memory_space<vmem>>, vector<128x128xf32>,
    %c0_i32_7 = arith.constant 0 : i32
    %12 = arith.cmpi eq, %arg1, %c0_i32_7 : i32
    %13 = arith.extui %12 : i1 to i32
    %c0_i32_8 = arith.constant 0 : i32
    %14 = arith.cmpi ne, %13, %c0_i32_8 : i32
    scf.if %14 {
      %c0_9 = arith.constant 0 : index
      %c0_10 = arith.constant 0 : index
      %15 = vector.load %arg6[%c0_9, %c0_10] : memref<128x128xf32, #tpu.memory_space<vmem>>, vector<128x128xf32>
      %c0_11 = arith.constant 0 : index
      %c0_12 = arith.constant 0 : index
      %16 = vector.load %arg4[%c0_11, %c0_12] : memref<1x128xf32, #tpu.memory_space<vmem>>, vector<1x128xf32>
      %17 = vector.broadcast %16 : vector<1x128xf32> to vector<128x128xf32>
      %18 = arith.addf %15, %17 : vector<128x128xf32>
      %cst_13 = arith.constant 0.000000e+00 : f32
      %19 = vector.broadcast %cst_13 : f32 to vector<128x128xf32>
      %20 = arith.maximumf %18, %19 : vector<128x128xf32>
      %c0_14 = arith.constant 0 : index
      %c0_15 = arith.constant 0 : index
      %21 = vector.load %arg5[%c0_14, %c0_15] : memref<128x128xf32, #tpu.memory_space<vmem>>, vector<128x128xf32>
      tpu.vector_store %arg5[%c0_14, %c0_15], %20 {strides = array<i32>} : memref<128x128xf32, #tpu.memory_space<vmem>>, vector<128x128xf32>,
    } else {
    }
    return
  }
  func.func @transform_0(%arg0: i32, %arg1: i32) -> (i32, i32) {
    %c0_i32 = arith.constant 0 : i32
    return %arg0, %arg1 : i32, i32
  }
  func.func @transform_1(%arg0: i32, %arg1: i32) -> (i32, i32) {
    %c0_i32 = arith.constant 0 : i32
    %c0_i32_0 = arith.constant 0 : i32
    %c0_i32_1 = arith.constant 0 : i32
    return %c0_i32, %c0_i32_0 : i32, i32
  }
  func.func @transform_2(%arg0: i32, %arg1: i32) -> (i32, i32) {
    %c0_i32 = arith.constant 0 : i32
    %c0_i32_0 = arith.constant 0 : i32
    %c0_i32_1 = arith.constant 0 : i32
    return %c0_i32, %c0_i32_0 : i32, i32
  }
  func.func @transform_3(%arg0: i32, %arg1: i32) -> (i32, i32) {
    %c0_i32 = arith.constant 0 : i32
    %c0_i32_0 = arith.constant 0 : i32
    return %arg0, %c0_i32 : i32, i32
  }
}

</mosaic_0001>

<llo_original>
// kernel: tpu_custom_call.1
$region0: #{tpu_custom_call.1}
  #allocation0 [shape = 'u32[]', space=smem, size = 0x4, offset = 0x4, fixed_abs, tag = 'smem constant byte address 0x4 - core index']
  #allocation1 [shape = 'u32[144,128]{1,0:T(1,128)}', space=vmem, size = 0x12000, scoped, tag = 'internal scratch']
  #allocation2 [shape = 'f32[128,128]{1,0:T(8,128)}', space=vmem, size = 0x10000, scoped, tag = 'scratch operand']
  %s0 = inlined_call_operand.hbm [shape: f32[128,128], index: 0, kind: input, shape index: {}]
  %s1 = inlined_call_operand.hbm [shape: f32[128,128], index: 1, kind: input, shape index: {}]
  %s2 = inlined_call_operand.vmem [shape: f32[1,128], index: 2, kind: input, shape index: {}]
  %s3 = inlined_call_operand.hbm [shape: f32[128,128], index: 3, kind: output, shape index: {}]
  %s4 = sld [smem:[#allocation0]]
  $region38: #{tpu_custom_call.1} parent=0
    _
  %s6 = ssub.s32 1, %s4
  %s7 = scalar_select 0, %s6, %s4
  $region1: #{tpu_custom_call.1} parent=0
    #allocation3 [shape = 'u8[65536]{0}', space=vmem, size = 0x10000, scoped, tag = 'input window, operand 0, single buffered']
    #allocation4 [shape = 's32[1]{0}', space=sflag, size = 0x4, scoped, tag = 'scoped memory for tpu_custom_call.1']
    #allocation5 [shape = 's32[1]{0}', space=sflag, size = 0x4, scoped, tag = 'scoped memory for tpu_custom_call.1']
    #allocation6 [shape = 'u8[65536]{0}', space=vmem, size = 0x10000, scoped, tag = 'input window, operand 1, single buffered']
    #allocation7 [shape = 's32[1]{0}', space=sflag, size = 0x4, scoped, tag = 'scoped memory for tpu_custom_call.1']
    #allocation8 [shape = 'u8[65536]{0}', space=vmem, size = 0x10000, scoped, tag = 'output window, operand 0, single buffered']
    %8 = vsyncpa [#allocation4], 0
    %9 = vsyncpa [#allocation7], 0
    %10 = vsyncpa [#allocation5], 0
    // Predicated region
    $region2: #{tpu_custom_call.1} parent=1 // pred_check
      _
    $region3: #{tpu_custom_call.1} parent=1 // pred_check_branch
      %12 = sbr.rel (0) target = $region5
    $region4: #{tpu_custom_call.1} parent=1 // pred_region
      %s14 = ssub.s32 2048, 2048
      %15 = vsyncadd [#allocation4], %s14
      %s16 = sshll.u32 [#allocation3], 4
      %s17 = int_to_ptr.vmem [resolvable:$true] %s16
      %22 = dma.hbm_to_vmem [thread:$0]  %s0, 2048, %s17, [#allocation4], 128, 128, 8
    $region5: #{tpu_custom_call.1} parent=1 // pred_fallthru
      _
    // Predicated region
    $region6: #{tpu_custom_call.1} parent=1 // pred_check
      _
    $region7: #{tpu_custom_call.1} parent=1 // pred_check_branch
      %24 = sbr.rel (0) target = $region9
    $region8: #{tpu_custom_call.1} parent=1 // pred_region
      %s26 = ssub.s32 2048, 2048
      %27 = vsyncadd [#allocation7], %s26
      %s28 = sshll.u32 [#allocation6], 4
      %s29 = int_to_ptr.vmem [resolvable:$true] %s28
      %34 = dma.hbm_to_vmem [thread:$0]  %s1, 2048, %s29, [#allocation7], 128, 128, 8
    $region9: #{tpu_custom_call.1} parent=1 // pred_fallthru
      _
    // Predicated region
    $region10: #{tpu_custom_call.1} parent=1 // pred_check
      _
    $region11: #{tpu_custom_call.1} parent=1 // pred_check_branch
      %36 = sbr.rel (0) target = $region13
    $region12: #{tpu_custom_call.1} parent=1 // pred_region
      _
    $region13: #{tpu_custom_call.1} parent=1 // pred_fallthru
      _
    // Predicated region
    $region14: #{tpu_custom_call.1} parent=1 // pred_check
      _
    $region15: #{tpu_custom_call.1} parent=1 // pred_check_branch
      %38 = sbr.rel (0) target = $region17
    $region16: #{tpu_custom_call.1} parent=1 // pred_region
      %39 = dma.done [#allocation4], 2048
    $region17: #{tpu_custom_call.1} parent=1 // pred_fallthru
      _
    // Predicated region
    $region18: #{tpu_custom_call.1} parent=1 // pred_check
      _
    $region19: #{tpu_custom_call.1} parent=1 // pred_check_branch
      %41 = sbr.rel (0) target = $region21
    $region20: #{tpu_custom_call.1} parent=1 // pred_region
      %42 = dma.done [#allocation7], 2048
    $region21: #{tpu_custom_call.1} parent=1 // pred_fallthru
      _
    %p43 = scmp.eq.s32.totalorder 0, 0
    // Predicated region
    $region22: #{tpu_custom_call.1} parent=1 // pred_check
      %p44 = pneg %p43
    $region23: #{tpu_custom_call.1} parent=1 // pred_check_branch
      %46 = sbr.rel (%p44) target = $region25
    $region24: #{tpu_custom_call.1} parent=1 // pred_region
      %47 = vst [vmem:[#allocation2] sm:$0xff] 0.0
      %48 = vst [vmem:[#allocation2 + $0x8] sm:$0xff] 0.0
      %49 = vst [vmem:[#allocation2 + $0x10] sm:$0xff] 0.0
      %50 = vst [vmem:[#allocation2 + $0x18] sm:$0xff] 0.0
      %51 = vst [vmem:[#allocation2 + $0x20] sm:$0xff] 0.0
      %52 = vst [vmem:[#allocation2 + $0x28] sm:$0xff] 0.0
      %53 = vst [vmem:[#allocation2 + $0x30] sm:$0xff] 0.0
      %54 = vst [vmem:[#allocation2 + $0x38] sm:$0xff] 0.0
      %55 = vst [vmem:[#allocation2 + $0x40] sm:$0xff] 0.0
      %56 = vst [vmem:[#allocation2 + $0x48] sm:$0xff] 0.0
      %57 = vst [vmem:[#allocation2 + $0x50] sm:$0xff] 0.0
      %58 = vst [vmem:[#allocation2 + $0x58] sm:$0xff] 0.0
      %59 = vst [vmem:[#allocation2 + $0x60] sm:$0xff] 0.0
      %60 = vst [vmem:[#allocation2 + $0x68] sm:$0xff] 0.0
      %61 = vst [vmem:[#allocation2 + $0x70] sm:$0xff] 0.0
      %62 = vst [vmem:[#allocation2 + $0x78] sm:$0xff] 0.0
    $region25: #{tpu_custom_call.1} parent=1 // pred_fallthru
      _
    %s63 = smul.u32 0, 128
    %s64 = scalar_lea.vmem [#allocation6], %s63
    %v65 = vld [vmem:[%s64] sm:$0xff]
    %v66 = vld [vmem:[%s64 + $0x8] sm:$0xff]
    %v67 = vld [vmem:[%s64 + $0x10] sm:$0xff]
    %v68 = vld [vmem:[%s64 + $0x18] sm:$0xff]
    %v69 = vld [vmem:[%s64 + $0x20] sm:$0xff]
    %v70 = vld [vmem:[%s64 + $0x28] sm:$0xff]
    %v71 = vld [vmem:[%s64 + $0x30] sm:$0xff]
    %v72 = vld [vmem:[%s64 + $0x38] sm:$0xff]
    %v73 = vld [vmem:[%s64 + $0x40] sm:$0xff]
    %v74 = vld [vmem:[%s64 + $0x48] sm:$0xff]
    %v75 = vld [vmem:[%s64 + $0x50] sm:$0xff]
    %v76 = vld [vmem:[%s64 + $0x58] sm:$0xff]
    %v77 = vld [vmem:[%s64 + $0x60] sm:$0xff]
    %v78 = vld [vmem:[%s64 + $0x68] sm:$0xff]
    %v79 = vld [vmem:[%s64 + $0x70] sm:$0xff]
    %v80 = vld [vmem:[%s64 + $0x78] sm:$0xff]
    %v81 = vld [vmem:[#allocation2] sm:$0xff]
    %v82 = vld [vmem:[#allocation2 + $0x8] sm:$0xff]
    %v83 = vld [vmem:[#allocation2 + $0x10] sm:$0xff]
    %v84 = vld [vmem:[#allocation2 + $0x18] sm:$0xff]
    %v85 = vld [vmem:[#allocation2 + $0x20] sm:$0xff]
    %v86 = vld [vmem:[#allocation2 + $0x28] sm:$0xff]
    %v87 = vld [vmem:[#allocation2 + $0x30] sm:$0xff]
    %v88 = vld [vmem:[#allocation2 + $0x38] sm:$0xff]
    %v89 = vld [vmem:[#allocation2 + $0x40] sm:$0xff]
    %v90 = vld [vmem:[#allocation2 + $0x48] sm:$0xff]
    %v91 = vld [vmem:[#allocation2 + $0x50] sm:$0xff]
    %v92 = vld [vmem:[#allocation2 + $0x58] sm:$0xff]
    %v93 = vld [vmem:[#allocation2 + $0x60] sm:$0xff]
    %v94 = vld [vmem:[#allocation2 + $0x68] sm:$0xff]
    %v95 = vld [vmem:[#allocation2 + $0x70] sm:$0xff]
    %v96 = vld [vmem:[#allocation2 + $0x78] sm:$0xff]
    %v97 = vld [vmem:[#allocation3] sm:$0xff]
    %v98 = vld [vmem:[#allocation3 + $0x8] sm:$0xff]
    %v99 = vld [vmem:[#allocation3 + $0x10] sm:$0xff]
    %v100 = vld [vmem:[#allocation3 + $0x18] sm:$0xff]
    %v101 = vld [vmem:[#allocation3 + $0x20] sm:$0xff]
    %v102 = vld [vmem:[#allocation3 + $0x28] sm:$0xff]
    %v103 = vld [vmem:[#allocation3 + $0x30] sm:$0xff]
    %v104 = vld [vmem:[#allocation3 + $0x38] sm:$0xff]
    %v105 = vld [vmem:[#allocation3 + $0x40] sm:$0xff]
    %v106 = vld [vmem:[#allocation3 + $0x48] sm:$0xff]
    %v107 = vld [vmem:[#allocation3 + $0x50] sm:$0xff]
    %v108 = vld [vmem:[#allocation3 + $0x58] sm:$0xff]
    %v109 = vld [vmem:[#allocation3 + $0x60] sm:$0xff]
    %v110 = vld [vmem:[#allocation3 + $0x68] sm:$0xff]
    %v111 = vld [vmem:[#allocation3 + $0x70] sm:$0xff]
    %v112 = vld [vmem:[#allocation3 + $0x78] sm:$0xff]
    %113 = vmatprep.subr.mxu0 0.0
    %114 = vmatpush1.msra.mxu0 %v65
    %115 = vmatprep.subr.mxu0 0.0
    %116 = vmatpush1.msra.mxu0 %v66
    %117 = vmatprep.subr.mxu0 0.0
    %118 = vmatpush1.msra.mxu0 %v67
    %119 = vmatprep.subr.mxu0 0.0
    %120 = vmatpush1.msra.mxu0 %v68
    %121 = vmatprep.subr.mxu0 0.0
    %122 = vmatpush1.msra.mxu0 %v69
    %123 = vmatprep.subr.mxu0 0.0
    %124 = vmatpush1.msra.mxu0 %v70
    %125 = vmatprep.subr.mxu0 0.0
    %126 = vmatpush1.msra.mxu0 %v71
    %127 = vmatprep.subr.mxu0 0.0
    %128 = vmatpush1.msra.mxu0 %v72
    %129 = vmatprep.subr.mxu0 0.0
    %130 = vmatpush1.msra.mxu0 %v73
    %131 = vmatprep.subr.mxu0 0.0
    %132 = vmatpush1.msra.mxu0 %v74
    %133 = vmatprep.subr.mxu0 0.0
    %134 = vmatpush1.msra.mxu0 %v75
    %135 = vmatprep.subr.mxu0 0.0
    %136 = vmatpush1.msra.mxu0 %v76
    %137 = vmatprep.subr.mxu0 0.0
    %138 = vmatpush1.msra.mxu0 %v77
    %139 = vmatprep.subr.mxu0 0.0
    %140 = vmatpush1.msra.mxu0 %v78
    %141 = vmatprep.subr.mxu0 0.0
    %142 = vmatpush1.msra.mxu0 %v79
    %143 = vmatprep.subr.mxu0 0.0
    %144 = vmatpush1.msra.mxu0 %v80
    %145 = vmatprep.subr.mxu0 0.0
    %146 = vmatpush1.msra.mxu0 0.0
    %147 = vmatprep.subr.mxu0 0.0
    %148 = vmatpush1.msra.mxu0 0.0
    %149 = vmatprep.subr.mxu0 0.0
    %150 = vmatpush1.msra.mxu0 0.0
    %151 = vmatprep.subr.mxu0 0.0
    %152 = vmatpush1.msra.mxu0 0.0
    %153 = vmatprep.subr.mxu0 0.0
    %154 = vmatpush1.msra.mxu0 0.0
    %155 = vmatprep.subr.mxu0 0.0
    %156 = vmatpush1.msra.mxu0 0.0
    %157 = vmatprep.subr.mxu0 0.0
    %158 = vmatpush1.msra.mxu0 0.0
    %159 = vmatprep.subr.mxu0 0.0
    %160 = vmatpush1.msra.mxu0 0.0
    %161 = vmatprep.subr.mxu0 0.0
    %162 = vmatpush1.msra.mxu0 0.0
    %163 = vmatprep.subr.mxu0 0.0
    %164 = vmatpush1.msra.mxu0 0.0
    %165 = vmatprep.subr.mxu0 0.0
    %166 = vmatpush1.msra.mxu0 0.0
    %167 = vmatprep.subr.mxu0 0.0
    %168 = vmatpush1.msra.mxu0 0.0
    %169 = vmatprep.subr.mxu0 0.0
    %170 = vmatpush1.msra.mxu0 0.0
    %171 = vmatprep.subr.mxu0 0.0
    %172 = vmatpush1.msra.mxu0 0.0
    %173 = vmatprep.subr.mxu0 0.0
    %174 = vmatpush1.msra.mxu0 0.0
    %175 = vmatprep.subr.mxu0 0.0
    %176 = vmatpush1.msra.mxu0 0.0
    %177 = vmatprep.mubr.f32.mxu0 0.0
    %178 = vmatmul.mubr.f32.gmra.mrb[0].mxu0 %v97
    %v179 = vpop.f32.mrb[0].mxu0
    %v180 = vadd.f32 0.0, %v179
    %v181 = vpop.f32.mrb[0].mxu0
    %182 = vmatprep.mubr.f32.mxu0 0.0
    %183 = vmatmul.mubr.f32.gmra.mrb[0].mxu0 %v98
    %v184 = vpop.f32.mrb[0].mxu0
    %v185 = vadd.f32 0.0, %v184
    %v186 = vpop.f32.mrb[0].mxu0
    %187 = vmatprep.mubr.f32.mxu0 0.0
    %188 = vmatmul.mubr.f32.gmra.mrb[0].mxu0 %v99
    %v189 = vpop.f32.mrb[0].mxu0
    %v190 = vadd.f32 0.0, %v189
    %v191 = vpop.f32.mrb[0].mxu0
    %192 = vmatprep.mubr.f32.mxu0 0.0
    %193 = vmatmul.mubr.f32.gmra.mrb[0].mxu0 %v100
    %v194 = vpop.f32.mrb[0].mxu0
    %v195 = vadd.f32 0.0, %v194
    %v196 = vpop.f32.mrb[0].mxu0
    %197 = vmatprep.mubr.f32.mxu0 0.0
    %198 = vmatmul.mubr.f32.gmra.mrb[0].mxu0 %v101
    %v199 = vpop.f32.mrb[0].mxu0
    %v200 = vadd.f32 0.0, %v199
    %v201 = vpop.f32.mrb[0].mxu0
    %202 = vmatprep.mubr.f32.mxu0 0.0
    %203 = vmatmul.mubr.f32.gmra.mrb[0].mxu0 %v102
    %v204 = vpop.f32.mrb[0].mxu0
    %v205 = vadd.f32 0.0, %v204
    %v206 = vpop.f32.mrb[0].mxu0
    %207 = vmatprep.mubr.f32.mxu0 0.0
    %208 = vmatmul.mubr.f32.gmra.mrb[0].mxu0 %v103
    %v209 = vpop.f32.mrb[0].mxu0
    %v210 = vadd.f32 0.0, %v209
    %v211 = vpop.f32.mrb[0].mxu0
    %212 = vmatprep.mubr.f32.mxu0 0.0
    %213 = vmatmul.mubr.f32.gmra.mrb[0].mxu0 %v104
    %v214 = vpop.f32.mrb[0].mxu0
    %v215 = vadd.f32 0.0, %v214
    %v216 = vpop.f32.mrb[0].mxu0
    %217 = vmatprep.mubr.f32.mxu0 0.0
    %218 = vmatmul.mubr.f32.gmra.mrb[0].mxu0 %v105
    %v219 = vpop.f32.mrb[0].mxu0
    %v220 = vadd.f32 0.0, %v219
    %v221 = vpop.f32.mrb[0].mxu0
    %222 = vmatprep.mubr.f32.mxu0 0.0
    %223 = vmatmul.mubr.f32.gmra.mrb[0].mxu0 %v106
    %v224 = vpop.f32.mrb[0].mxu0
    %v225 = vadd.f32 0.0, %v224
    %v226 = vpop.f32.mrb[0].mxu0
    %227 = vmatprep.mubr.f32.mxu0 0.0
    %228 = vmatmul.mubr.f32.gmra.mrb[0].mxu0 %v107
    %v229 = vpop.f32.mrb[0].mxu0
    %v230 = vadd.f32 0.0, %v229
    %v231 = vpop.f32.mrb[0].mxu0
    %232 = vmatprep.mubr.f32.mxu0 0.0
    %233 = vmatmul.mubr.f32.gmra.mrb[0].mxu0 %v108
    %v234 = vpop.f32.mrb[0].mxu0
    %v235 = vadd.f32 0.0, %v234
    %v236 = vpop.f32.mrb[0].mxu0
    %237 = vmatprep.mubr.f32.mxu0 0.0
    %238 = vmatmul.mubr.f32.gmra.mrb[0].mxu0 %v109
    %v239 = vpop.f32.mrb[0].mxu0
    %v240 = vadd.f32 0.0, %v239
    %v241 = vpop.f32.mrb[0].mxu0
    %242 = vmatprep.mubr.f32.mxu0 0.0
    %243 = vmatmul.mubr.f32.gmra.mrb[0].mxu0 %v110
    %v244 = vpop.f32.mrb[0].mxu0
    %v245 = vadd.f32 0.0, %v244
    %v246 = vpop.f32.mrb[0].mxu0
    %247 = vmatprep.mubr.f32.mxu0 0.0
    %248 = vmatmul.mubr.f32.gmra.mrb[0].mxu0 %v111
    %v249 = vpop.f32.mrb[0].mxu0
    %v250 = vadd.f32 0.0, %v249
    %v251 = vpop.f32.mrb[0].mxu0
    %252 = vmatprep.mubr.f32.mxu0 0.0
    %253 = vmatmul.mubr.f32.gmra.mrb[0].mxu0 %v112
    %v254 = vpop.f32.mrb[0].mxu0
    %v255 = vadd.f32 0.0, %v254
    %v256 = vpop.f32.mrb[0].mxu0
    %257 = vdwg.mxu0
    %v258 = vadd.f32 %v81, %v180
    %v259 = vadd.f32 %v82, %v185
    %v260 = vadd.f32 %v83, %v190
    %v261 = vadd.f32 %v84, %v195
    %v262 = vadd.f32 %v85, %v200
    %v263 = vadd.f32 %v86, %v205
    %v264 = vadd.f32 %v87, %v210
    %v265 = vadd.f32 %v88, %v215
    %v266 = vadd.f32 %v89, %v220
    %v267 = vadd.f32 %v90, %v225
    %v268 = vadd.f32 %v91, %v230
    %v269 = vadd.f32 %v92, %v235
    %v270 = vadd.f32 %v93, %v240
    %v271 = vadd.f32 %v94, %v245
    %v272 = vadd.f32 %v95, %v250
    %v273 = vadd.f32 %v96, %v255
    %274 = vst [vmem:[#allocation2] sm:$0xff] %v258
    %275 = vst [vmem:[#allocation2 + $0x8] sm:$0xff] %v259
    %276 = vst [vmem:[#allocation2 + $0x10] sm:$0xff] %v260
    %277 = vst [vmem:[#allocation2 + $0x18] sm:$0xff] %v261
    %278 = vst [vmem:[#allocation2 + $0x20] sm:$0xff] %v262
    %279 = vst [vmem:[#allocation2 + $0x28] sm:$0xff] %v263
    %280 = vst [vmem:[#allocation2 + $0x30] sm:$0xff] %v264
    %281 = vst [vmem:[#allocation2 + $0x38] sm:$0xff] %v265
    %282 = vst [vmem:[#allocation2 + $0x40] sm:$0xff] %v266
    %283 = vst [vmem:[#allocation2 + $0x48] sm:$0xff] %v267
    %284 = vst [vmem:[#allocation2 + $0x50] sm:$0xff] %v268
    %285 = vst [vmem:[#allocation2 + $0x58] sm:$0xff] %v269
    %286 = vst [vmem:[#allocation2 + $0x60] sm:$0xff] %v270
    %287 = vst [vmem:[#allocation2 + $0x68] sm:$0xff] %v271
    %288 = vst [vmem:[#allocation2 + $0x70] sm:$0xff] %v272
    %289 = vst [vmem:[#allocation2 + $0x78] sm:$0xff] %v273
    // Predicated region
    $region26: #{tpu_custom_call.1} parent=1 // pred_check
      %p290 = pneg %p43
    $region27: #{tpu_custom_call.1} parent=1 // pred_check_branch
      %292 = sbr.rel (%p290) target = $region29
    $region28: #{tpu_custom_call.1} parent=1 // pred_region
      %v293 = vld [vmem:[#allocation2] sm:$0xff]
      %v294 = vld [vmem:[#allocation2 + $0x8] sm:$0xff]
      %v295 = vld [vmem:[#allocation2 + $0x10] sm:$0xff]
      %v296 = vld [vmem:[#allocation2 + $0x18] sm:$0xff]
      %v297 = vld [vmem:[#allocation2 + $0x20] sm:$0xff]
      %v298 = vld [vmem:[#allocation2 + $0x28] sm:$0xff]
      %v299 = vld [vmem:[#allocation2 + $0x30] sm:$0xff]
      %v300 = vld [vmem:[#allocation2 + $0x38] sm:$0xff]
      %v301 = vld [vmem:[#allocation2 + $0x40] sm:$0xff]
      %v302 = vld [vmem:[#allocation2 + $0x48] sm:$0xff]
      %v303 = vld [vmem:[#allocation2 + $0x50] sm:$0xff]
      %v304 = vld [vmem:[#allocation2 + $0x58] sm:$0xff]
      %v305 = vld [vmem:[#allocation2 + $0x60] sm:$0xff]
      %v306 = vld [vmem:[#allocation2 + $0x68] sm:$0xff]
      %v307 = vld [vmem:[#allocation2 + $0x70] sm:$0xff]
      %v308 = vld [vmem:[#allocation2 + $0x78] sm:$0xff]
      %v309 = vld [vmem:[%s2] sm:$0x1]
      %v311 = vlaneseq
      %v312 = vshrl.u32 %v311, 7
      %v313 = vsub.s32 0, %v312
      %v314 = vrot.slane %v309, %v313
      %v316 = vadd.f32 %v293, %v314
      %v317 = vadd.f32 %v294, %v314
      %v318 = vadd.f32 %v295, %v314
      %v319 = vadd.f32 %v296, %v314
      %v320 = vadd.f32 %v297, %v314
      %v321 = vadd.f32 %v298, %v314
      %v322 = vadd.f32 %v299, %v314
      %v323 = vadd.f32 %v300, %v314
      %v324 = vadd.f32 %v301, %v314
      %v325 = vadd.f32 %v302, %v314
      %v326 = vadd.f32 %v303, %v314
      %v327 = vadd.f32 %v304, %v314
      %v328 = vadd.f32 %v305, %v314
      %v329 = vadd.f32 %v306, %v314
      %v330 = vadd.f32 %v307, %v314
      %v331 = vadd.f32 %v308, %v314
      %v332 = vmax.f32 %v316, 0.0
      %v333 = vmax.f32 %v317, 0.0
      %v334 = vmax.f32 %v318, 0.0
      %v335 = vmax.f32 %v319, 0.0
      %v336 = vmax.f32 %v320, 0.0
      %v337 = vmax.f32 %v321, 0.0
      %v338 = vmax.f32 %v322, 0.0
      %v339 = vmax.f32 %v323, 0.0
      %v340 = vmax.f32 %v324, 0.0
      %v341 = vmax.f32 %v325, 0.0
      %v342 = vmax.f32 %v326, 0.0
      %v343 = vmax.f32 %v327, 0.0
      %v344 = vmax.f32 %v328, 0.0
      %v345 = vmax.f32 %v329, 0.0
      %v346 = vmax.f32 %v330, 0.0
      %v347 = vmax.f32 %v331, 0.0
      %348 = vst [vmem:[#allocation8] sm:$0xff] %v332
      %349 = vst [vmem:[#allocation8 + $0x8] sm:$0xff] %v333
      %350 = vst [vmem:[#allocation8 + $0x10] sm:$0xff] %v334
      %351 = vst [vmem:[#allocation8 + $0x18] sm:$0xff] %v335
      %352 = vst [vmem:[#allocation8 + $0x20] sm:$0xff] %v336
      %353 = vst [vmem:[#allocation8 + $0x28] sm:$0xff] %v337
      %354 = vst [vmem:[#allocation8 + $0x30] sm:$0xff] %v338
      %355 = vst [vmem:[#allocation8 + $0x38] sm:$0xff] %v339
      %356 = vst [vmem:[#allocation8 + $0x40] sm:$0xff] %v340
      %357 = vst [vmem:[#allocation8 + $0x48] sm:$0xff] %v341
      %358 = vst [vmem:[#allocation8 + $0x50] sm:$0xff] %v342
      %359 = vst [vmem:[#allocation8 + $0x58] sm:$0xff] %v343
      %360 = vst [vmem:[#allocation8 + $0x60] sm:$0xff] %v344
      %361 = vst [vmem:[#allocation8 + $0x68] sm:$0xff] %v345
      %362 = vst [vmem:[#allocation8 + $0x70] sm:$0xff] %v346
      %363 = vst [vmem:[#allocation8 + $0x78] sm:$0xff] %v347
    $region29: #{tpu_custom_call.1} parent=1 // pred_fallthru
      _
    // Predicated region
    $region30: #{tpu_custom_call.1} parent=1 // pred_check
      _
    $region31: #{tpu_custom_call.1} parent=1 // pred_check_branch
      %365 = sbr.rel (0) target = $region33
    $region32: #{tpu_custom_call.1} parent=1 // pred_region
      %s367 = ssub.s32 2048, 2048
      %368 = vsyncadd [#allocation5], %s367
      %s369 = sshll.u32 [#allocation8], 4
      %s370 = int_to_ptr.vmem [resolvable:$true] %s369
      %375 = dma.vmem_to_hbm [thread:$0]  %s370, 2048, %s3, [#allocation5], 128, 128, 8
    $region33: #{tpu_custom_call.1} parent=1 // pred_fallthru
      _
    // Predicated region
    $region34: #{tpu_custom_call.1} parent=1 // pred_check
      _
    $region35: #{tpu_custom_call.1} parent=1 // pred_check_branch
      %377 = sbr.rel (0) target = $region37
    $region36: #{tpu_custom_call.1} parent=1 // pred_region
      %378 = dma.done [#allocation5], 2048
    $region37: #{tpu_custom_call.1} parent=1 // pred_fallthru
      _
    %379 = vsyncpa [#allocation4], 1
    %380 = vsyncpa [#allocation7], 1
    %381 = vsyncpa [#allocation5], 1

</llo_original>
